<compile_context>
chip_gen: v7x
topology: tpu7x:2x2x1
jax: 0.10.0
libtpu: 0.0.40
codegen_flags: <defaults>
</compile_context>

<pallas_src>
import jax
import jax.numpy as jnp
from jax.experimental import pallas as pl
from jax.experimental.pallas import tpu as pltpu

_LANE = 128
_SUBLANE = 8

# Budget for keeping the whole (padded) weight resident in VMEM.  Pallas
# double-buffers each input stream, so the real footprint is ~2x this plus the
# x / out tiles; 16 MiB keeps the fast path comfortably inside v7x's 64 MiB
# per-TensorCore VMEM (and the scoped limit requested below) on every
# generation.
_RESIDENT_W_BYTES = 16 * 1024 * 1024
# Above the 16 MiB (v5e) / 32 MiB (v6e, v7x) scoped defaults, below v7x's
# 64 MiB physical VMEM.
_VMEM_LIMIT_BYTES = 48 * 1024 * 1024


def _round_up(x: int, m: int) -> int:
    return ((x + m - 1) // m) * m


def _largest_aligned_divisor(extent: int, max_tile: int, quantum: int) -> int:
    """Largest multiple of `quantum` that divides `extent` and is <= max_tile.

    `extent` is always a multiple of `quantum` here, so `quantum` itself is a
    valid fallback.
    """
    best = quantum
    t = quantum
    limit = min(max_tile, extent)
    while t <= limit:
        if extent % t == 0:
            best = t
        t += quantum
    return best


# ----------------------------------------------------------------------------
# Kernels
# ----------------------------------------------------------------------------
def _linear_tanh_resident_kernel(x_ref, w_ref, b_ref, o_ref):
    # x_ref: (tm, K)  w_ref: (K, Np)  b_ref: (1, Np)  o_ref: (tm, Np)
    # Whole weight + bias are VMEM-resident (constant index_map); one MXU pass
    # + bias + tanh per M tile, no accumulator scratch needed.
    acc = jnp.dot(x_ref[...], w_ref[...], preferred_element_type=jnp.float32)
    o_ref[...] = jnp.tanh(acc + b_ref[...]).astype(o_ref.dtype)


def _linear_tanh_tiled_kernel_f32(x_ref, w_ref, b_ref, o_ref):
    # f32 output: the output block (constant index across k) doubles as the
    # accumulator -- no VMEM scratch, one less load/store stream.
    k = pl.program_id(2)

    @pl.when(k == 0)
    def _():
        o_ref[...] = jnp.zeros_like(o_ref)

    o_ref[...] += jnp.dot(x_ref[...], w_ref[...],
                          preferred_element_type=jnp.float32)

    @pl.when(k == pl.num_programs(2) - 1)
    def _():
        o_ref[...] = jnp.tanh(o_ref[...] + b_ref[...])


def _linear_tanh_tiled_kernel_acc(x_ref, w_ref, b_ref, o_ref, acc_ref):
    # Non-f32 outputs: keep a f32 VMEM accumulator, cast only in the finalize.
    k = pl.program_id(2)

    @pl.when(k == 0)
    def _():
        acc_ref[...] = jnp.zeros_like(acc_ref)

    acc_ref[...] += jnp.dot(x_ref[...], w_ref[...],
                            preferred_element_type=jnp.float32)

    @pl.when(k == pl.num_programs(2) - 1)
    def _():
        o_ref[...] = jnp.tanh(acc_ref[...] + b_ref[...]).astype(o_ref.dtype)


# ----------------------------------------------------------------------------
# Parameter prep (call once; amortized over every forward call)
# ----------------------------------------------------------------------------
def prepare_params(weight, bias, *, max_resident_bytes=_RESIDENT_W_BYTES):
    """One-time prep of nn.Linear parameters for the Pallas kernel.

    * transposes the PyTorch [out_dim, in_dim] weight to the MXU-native
      [in_dim, out_dim] layout (no per-tile transpose inside the kernel),
    * zero-pads the output dim up to a lane multiple (lane-dense `vst` stores),
    * zero-pads the input dim up to a lane multiple only when the weight is
      too big to stay VMEM-resident (K-tiled fallback path).
    """
    out_dim, in_dim = weight.shape
    np_ = _round_up(out_dim, _LANE)

    w_t = weight.T  # (in_dim, out_dim)
    b = bias
    if np_ != out_dim:
        w_t = jnp.pad(w_t, ((0, 0), (0, np_ - out_dim)))
        b = jnp.pad(b, (0, np_ - out_dim))

    resident = w_t.size * w_t.dtype.itemsize <= max_resident_bytes
    if not resident:
        kp = _round_up(in_dim, _LANE)
        if kp != in_dim:
            w_t = jnp.pad(w_t, ((0, kp - in_dim), (0, 0)))

    return {
        "w_t": w_t,                 # (in_dim [or kp], np_)
        "bias": b.reshape(1, np_),  # (1, np_)
        "out_dim": out_dim,
        "in_dim": in_dim,
        "resident": resident,
    }


# ----------------------------------------------------------------------------
# Forward pass
# ----------------------------------------------------------------------------
def linear_regression_model(x, weight=None, bias=None, *, params=None,
                            tm=256, tn=256, tk=1024):
    """Forward pass of LinearRegressionModel: tanh(x @ weight.T + bias).

    Args:
      x:      f32[batch, input_dim]
      weight: f32[output_dim, input_dim]  (PyTorch nn.Linear layout)
      bias:   f32[output_dim]
      params: optional result of prepare_params(weight, bias); pass it to hoist
              the one-time weight transpose / padding out of the hot path.
    Returns:
      f32[batch, output_dim]
    """
    if params is None:
        params = prepare_params(weight, bias)
    w_t, b_p = params["w_t"], params["bias"]
    out_dim, in_dim = params["out_dim"], params["in_dim"]
    np_ = w_t.shape[1]

    batch, x_in = x.shape
    assert x_in == in_dim, "x feature dim does not match weight"

    itemsize = jnp.dtype(x.dtype).itemsize
    mp0 = _round_up(batch, _SUBLANE)

    # M tile: clamp to the problem, then split into >=2 blocks when possible so
    # the "parallel" M axis can be sharded across v7x's two TensorCores.
    tm_eff = min(tm, mp0)
    if mp0 > _SUBLANE and mp0 // tm_eff < 2:
        tm_eff = _round_up(-(-mp0 // 2), _SUBLANE)

    def _pad_m(tm_sel):
        mp = _round_up(mp0, tm_sel)
        xp = x if mp == batch else jnp.pad(x, ((0, mp - batch), (0, 0)))
        return mp, xp

    if params["resident"]:
        # ---------------- Fast path: weight-resident, grid over M only -------
        # W / bias use constant index_maps (DMA'd once); the K dim is a
        # full-extent block, so x never needs per-call K padding.
        def footprint(tm_sel):  # ~2x for double-buffering of each stream
            return 2 * itemsize * (tm_sel * in_dim + in_dim * np_ + np_
                                   + tm_sel * np_)

        while tm_eff > _SUBLANE and footprint(tm_eff) > _VMEM_LIMIT_BYTES:
            tm_eff = _round_up(tm_eff // 2, _SUBLANE)

        mp, xp = _pad_m(tm_eff)
        grid = (mp // tm_eff,)

        out = pl.pallas_call(
            _linear_tanh_resident_kernel,
            out_shape=jax.ShapeDtypeStruct((mp, np_), x.dtype),
            grid_spec=pltpu.PrefetchScalarGridSpec(
                num_scalar_prefetch=0,
                grid=grid,
                in_specs=[
                    pl.BlockSpec((tm_eff, in_dim), lambda i: (i, 0)),  # x tile
                    pl.BlockSpec((in_dim, np_), lambda i: (0, 0)),     # W (resident)
                    pl.BlockSpec((1, np_), lambda i: (0, 0)),          # bias (resident)
                ],
                out_specs=pl.BlockSpec((tm_eff, np_), lambda i: (i, 0)),
            ),
            compiler_params=pltpu.CompilerParams(
                dimension_semantics=("parallel",),
                vmem_limit_bytes=_VMEM_LIMIT_BYTES),
        )(xp, w_t, b_p)
    else:
        # ---------------- Fallback: (M, N, K) tiled reduction ----------------
        kp = w_t.shape[0]
        tn_eff = _largest_aligned_divisor(np_, tn, _LANE)
        tk_eff = _largest_aligned_divisor(kp, tk, _LANE)

        mp, xp = _pad_m(tm_eff)
        # TODO(synk): mask the K tail in-kernel instead of padding x through HBM
        # when in_dim is not lane-aligned (only hit on the >16 MiB-weight path).
        if kp != in_dim:
            xp = jnp.pad(xp, ((0, 0), (0, kp - in_dim)))

        grid = (mp // tm_eff, np_ // tn_eff, kp // tk_eff)
        f32_out = jnp.dtype(x.dtype) == jnp.float32
        kernel = (_linear_tanh_tiled_kernel_f32 if f32_out
                  else _linear_tanh_tiled_kernel_acc)
        scratch = [] if f32_out else [pltpu.VMEM((tm_eff, tn_eff), jnp.float32)]

        out = pl.pallas_call(
            kernel,
            out_shape=jax.ShapeDtypeStruct((mp, np_), x.dtype),
            grid_spec=pltpu.PrefetchScalarGridSpec(
                num_scalar_prefetch=0,
                grid=grid,
                in_specs=[
                    pl.BlockSpec((tm_eff, tk_eff), lambda i, j, k: (i, k)),  # x
                    pl.BlockSpec((tk_eff, tn_eff), lambda i, j, k: (k, j)),  # W.T slab
                    pl.BlockSpec((1, tn_eff), lambda i, j, k: (0, j)),       # bias
                ],
                out_specs=pl.BlockSpec((tm_eff, tn_eff), lambda i, j, k: (i, j)),
                scratch_shapes=scratch,
            ),
            compiler_params=pltpu.CompilerParams(
                dimension_semantics=("parallel", "parallel", "arbitrary"),
                vmem_limit_bytes=_VMEM_LIMIT_BYTES),
        )(xp, w_t, b_p)

    if mp != batch or np_ != out_dim:
        out = out[:batch, :out_dim]
    return out


def _reference(x, weight, bias):
    return jnp.tanh(x @ weight.T + bias)


if __name__ == "__main__":
    key = jax.random.PRNGKey(0)
    k1, k2, k3, k4, k5, k6 = jax.random.split(key, 6)

    # --- Small shapes implied by the module (fast, weight-resident path) -----
    batch, input_dim, output_dim = 8, 32, 16
    x = jax.random.normal(k1, (batch, input_dim), dtype=jnp.float32)
    bound = 1.0 / jnp.sqrt(jnp.float32(input_dim))
    weight = jax.random.uniform(k2, (output_dim, input_dim),
                                minval=-bound, maxval=bound, dtype=jnp.float32)
    bias = jax.random.uniform(k3, (output_dim,),
                              minval=-bound, maxval=bound, dtype=jnp.float32)

    params = prepare_params(weight, bias)          # one-time prep, reused below
    out = jax.block_until_ready(linear_regression_model(x, params=params))
    ref = _reference(x, weight, bias)
    assert out.shape == (batch, output_dim)
    assert jnp.allclose(out, ref, atol=1e-5, rtol=1e-5)

    # --- Larger shapes: still weight-resident, M split across 2 blocks -------
    b2, d_in2, d_out2 = 256, 512, 384
    x2 = jax.random.normal(k4, (b2, d_in2), dtype=jnp.float32)
    bound2 = 1.0 / jnp.sqrt(jnp.float32(d_in2))
    w2 = jax.random.uniform(k5, (d_out2, d_in2),
                            minval=-bound2, maxval=bound2, dtype=jnp.float32)
    b2v = jax.random.uniform(k6, (d_out2,),
                             minval=-bound2, maxval=bound2, dtype=jnp.float32)

    params2 = prepare_params(w2, b2v)
    out2 = jax.block_until_ready(linear_regression_model(x2, params=params2))
    ref2 = _reference(x2, w2, b2v)
    assert out2.shape == (b2, d_out2)
    assert jnp.allclose(out2, ref2, atol=2e-5, rtol=2e-5)

    # --- Force the (M, N, K) tiled fallback path to exercise it too ----------
    params2_tiled = prepare_params(w2, b2v, max_resident_bytes=0)
    out3 = jax.block_until_ready(
        linear_regression_model(x2, params=params2_tiled))
    assert out3.shape == (b2, d_out2)
    assert jnp.allclose(out3, ref2, atol=2e-5, rtol=2e-5)

    print("KERNEL_OK")
</pallas_src>

<mosaic_0001>
module attributes {stable_mosaic.version = 11 : i64} {
  func.func @_linear_tanh_resident_kernel(%arg0: i32, %arg1: memref<8x32xf32, #tpu.memory_space<vmem>>, %arg2: memref<32x128xf32, #tpu.memory_space<vmem>>, %arg3: memref<1x128xf32, #tpu.memory_space<vmem>>, %arg4: memref<8x128xf32, #tpu.memory_space<vmem>>) attributes {dimension_semantics = [#tpu.dimension_semantics<parallel>], iteration_bounds = array<i64: 1>, scalar_prefetch = 0 : i64, scratch_operands = 0 : i64, tpu.core_type = #tpu.core_type<tc>, window_params = [{transform_indices = @transform_0, window_bounds = array<i64: 8, 32>}, {pipeline_mode = #tpu.pipeline_mode<synchronous>, transform_indices = @transform_1, window_bounds = array<i64: 32, 128>}, {pipeline_mode = #tpu.pipeline_mode<synchronous>, transform_indices = @transform_2, window_bounds = array<i64: 1, 128>}, {transform_indices = @transform_3, window_bounds = array<i64: 8, 128>}]} {
    %c0 = arith.constant 0 : index
    %c0_0 = arith.constant 0 : index
    %0 = vector.load %arg1[%c0, %c0_0] : memref<8x32xf32, #tpu.memory_space<vmem>>, vector<8x32xf32>
    %c0_1 = arith.constant 0 : index
    %c0_2 = arith.constant 0 : index
    %1 = vector.load %arg2[%c0_1, %c0_2] : memref<32x128xf32, #tpu.memory_space<vmem>>, vector<32x128xf32>
    %cst = arith.constant dense<0.000000e+00> : vector<8x128xf32>
    %2 = tpu.matmul %0, %1, %cst {dimension_numbers = #tpu.dot_dimension_numbers<[1], [0], [0], [1], [0, 0, 1, 1], [], []>} : vector<8x32xf32>, vector<32x128xf32>, vector<8x128xf32> -> vector<8x128xf32>
    %c0_3 = arith.constant 0 : index
    %c0_4 = arith.constant 0 : index
    %3 = vector.load %arg3[%c0_3, %c0_4] : memref<1x128xf32, #tpu.memory_space<vmem>>, vector<1x128xf32>
    %4 = vector.broadcast %3 : vector<1x128xf32> to vector<8x128xf32>
    %5 = arith.addf %2, %4 : vector<8x128xf32>
    %6 = math.tanh %5 : vector<8x128xf32>
    %c0_5 = arith.constant 0 : index
    %c0_6 = arith.constant 0 : index
    %7 = vector.load %arg4[%c0_5, %c0_6] : memref<8x128xf32, #tpu.memory_space<vmem>>, vector<8x128xf32>
    tpu.vector_store %arg4[%c0_5, %c0_6], %6 {strides = array<i32>} : memref<8x128xf32, #tpu.memory_space<vmem>>, vector<8x128xf32>,
    return
  }
  func.func @transform_0(%arg0: i32) -> (i32, i32) {
    %c0_i32 = arith.constant 0 : i32
    %c0_i32_0 = arith.constant 0 : i32
    return %arg0, %c0_i32 : i32, i32
  }
  func.func @transform_1(%arg0: i32) -> (i32, i32) {
    %c0_i32 = arith.constant 0 : i32
    %c0_i32_0 = arith.constant 0 : i32
    %c0_i32_1 = arith.constant 0 : i32
    return %c0_i32, %c0_i32_0 : i32, i32
  }
  func.func @transform_2(%arg0: i32) -> (i32, i32) {
    %c0_i32 = arith.constant 0 : i32
    %c0_i32_0 = arith.constant 0 : i32
    %c0_i32_1 = arith.constant 0 : i32
    return %c0_i32, %c0_i32_0 : i32, i32
  }
  func.func @transform_3(%arg0: i32) -> (i32, i32) {
    %c0_i32 = arith.constant 0 : i32
    %c0_i32_0 = arith.constant 0 : i32
    return %arg0, %c0_i32 : i32, i32
  }
}

</mosaic_0001>

<llo_original>
// kernel: tpu_custom_call.1
$region0: #{tpu_custom_call.1}
  #allocation0 [shape = 'u32[]', space=smem, size = 0x4, offset = 0x4, fixed_abs, tag = 'smem constant byte address 0x4 - core index']
  #allocation1 [shape = 'u32[144,128]{1,0:T(1,128)}', space=vmem, size = 0x12000, scoped, tag = 'internal scratch']
  %s0 = inlined_call_operand.hbm [shape: f32[8,32], index: 0, kind: input, shape index: {}]
  %s1 = inlined_call_operand.hbm [shape: f32[32,128], index: 1, kind: input, shape index: {}]
  %s2 = inlined_call_operand.vmem [shape: f32[1,128], index: 2, kind: input, shape index: {}]
  %s3 = inlined_call_operand.hbm [shape: f32[8,128], index: 3, kind: output, shape index: {}]
  %s4 = sld [smem:[#allocation0]]
  $region30: #{tpu_custom_call.1} parent=0
    _
  %s6 = ssub.s32 1, %s4
  %s7 = scalar_select 0, %s6, %s4
  $region1: #{tpu_custom_call.1} parent=0
    #allocation2 [shape = 'u8[4096]{0}', space=vmem, size = 0x1000, scoped, tag = 'input window, operand 0, single buffered']
    #allocation3 [shape = 's32[1]{0}', space=sflag, size = 0x4, scoped, tag = 'scoped memory for tpu_custom_call.1']
    #allocation4 [shape = 's32[1]{0}', space=sflag, size = 0x4, scoped, tag = 'scoped memory for tpu_custom_call.1']
    #allocation5 [shape = 'u8[16384]{0}', space=vmem, size = 0x4000, scoped, tag = 'input window, operand 1, single buffered']
    #allocation6 [shape = 's32[1]{0}', space=sflag, size = 0x4, scoped, tag = 'scoped memory for tpu_custom_call.1']
    #allocation7 [shape = 'u8[4096]{0}', space=vmem, size = 0x1000, scoped, tag = 'output window, operand 0, single buffered']
    %8 = vsyncpa [#allocation3], 0
    %9 = vsyncpa [#allocation6], 0
    %10 = vsyncpa [#allocation4], 0
    // Predicated region
    $region2: #{tpu_custom_call.1} parent=1 // pred_check
      _
    $region3: #{tpu_custom_call.1} parent=1 // pred_check_branch
      %12 = sbr.rel (0) target = $region5
    $region4: #{tpu_custom_call.1} parent=1 // pred_region
      %s14 = ssub.s32 128, 128
      %15 = vsyncadd [#allocation3], %s14
      %s17 = sshll.u32 [#allocation2], 4
      %s18 = int_to_ptr.vmem [resolvable:$true] %s17
      %20 = dma.hbm_to_vmem [thread:$0]  %s0, 128, %s18, [#allocation3]
    $region5: #{tpu_custom_call.1} parent=1 // pred_fallthru
      _
    // Predicated region
    $region6: #{tpu_custom_call.1} parent=1 // pred_check
      _
    $region7: #{tpu_custom_call.1} parent=1 // pred_check_branch
      %22 = sbr.rel (0) target = $region9
    $region8: #{tpu_custom_call.1} parent=1 // pred_region
      %s24 = ssub.s32 512, 512
      %25 = vsyncadd [#allocation6], %s24
      %s26 = sshll.u32 [#allocation5], 4
      %s27 = int_to_ptr.vmem [resolvable:$true] %s26
      %32 = dma.hbm_to_vmem [thread:$0]  %s1, 512, %s27, [#allocation6], 128, 128, 8
    $region9: #{tpu_custom_call.1} parent=1 // pred_fallthru
      _
    // Predicated region
    $region10: #{tpu_custom_call.1} parent=1 // pred_check
      _
    $region11: #{tpu_custom_call.1} parent=1 // pred_check_branch
      %34 = sbr.rel (0) target = $region13
    $region12: #{tpu_custom_call.1} parent=1 // pred_region
      _
    $region13: #{tpu_custom_call.1} parent=1 // pred_fallthru
      _
    // Predicated region
    $region14: #{tpu_custom_call.1} parent=1 // pred_check
      _
    $region15: #{tpu_custom_call.1} parent=1 // pred_check_branch
      %36 = sbr.rel (0) target = $region17
    $region16: #{tpu_custom_call.1} parent=1 // pred_region
      %37 = dma.done [#allocation3], 128
    $region17: #{tpu_custom_call.1} parent=1 // pred_fallthru
      _
    // Predicated region
    $region18: #{tpu_custom_call.1} parent=1 // pred_check
      _
    $region19: #{tpu_custom_call.1} parent=1 // pred_check_branch
      %39 = sbr.rel (0) target = $region21
    $region20: #{tpu_custom_call.1} parent=1 // pred_region
      %40 = dma.done [#allocation6], 512
    $region21: #{tpu_custom_call.1} parent=1 // pred_fallthru
      _
    %v41 = vld [vmem:[#allocation2] sm:$0xff]
    %v42 = vld [vmem:[#allocation5] sm:$0xff]
    %v43 = vld [vmem:[#allocation5 + $0x8] sm:$0xff]
    %v44 = vld [vmem:[#allocation5 + $0x10] sm:$0xff]
    %v45 = vld [vmem:[#allocation5 + $0x18] sm:$0xff]
    %v46 = vld [vmem:[%s2] sm:$0x1]
    %v48 = vlaneseq
    %v49 = vshrl.u32 %v48, 7
    %v50 = vsub.s32 0, %v49
    %v51 = vrot.slane %v46, %v50
    %vm53 = vcmask 261120
    %v55 = vsel %vm53, %v41, 0
    %57 = vmatprep.subr.mxu0 0.0
    %58 = vmatpush1.msra.mxu0 %v42
    %59 = vmatprep.subr.mxu0 0.0
    %60 = vmatpush1.msra.mxu0 %v43
    %61 = vmatprep.subr.mxu0 0.0
    %62 = vmatpush1.msra.mxu0 %v44
    %63 = vmatprep.subr.mxu0 0.0
    %64 = vmatpush1.msra.mxu0 %v45
    %65 = vmatprep.subr.mxu0 0.0
    %66 = vmatpush1.msra.mxu0 0.0
    %67 = vmatprep.subr.mxu0 0.0
    %68 = vmatpush1.msra.mxu0 0.0
    %69 = vmatprep.subr.mxu0 0.0
    %70 = vmatpush1.msra.mxu0 0.0
    %71 = vmatprep.subr.mxu0 0.0
    %72 = vmatpush1.msra.mxu0 0.0
    %73 = vmatprep.subr.mxu0 0.0
    %74 = vmatpush1.msra.mxu0 0.0
    %75 = vmatprep.subr.mxu0 0.0
    %76 = vmatpush1.msra.mxu0 0.0
    %77 = vmatprep.subr.mxu0 0.0
    %78 = vmatpush1.msra.mxu0 0.0
    %79 = vmatprep.subr.mxu0 0.0
    %80 = vmatpush1.msra.mxu0 0.0
    %81 = vmatprep.subr.mxu0 0.0
    %82 = vmatpush1.msra.mxu0 0.0
    %83 = vmatprep.subr.mxu0 0.0
    %84 = vmatpush1.msra.mxu0 0.0
    %85 = vmatprep.subr.mxu0 0.0
    %86 = vmatpush1.msra.mxu0 0.0
    %87 = vmatprep.subr.mxu0 0.0
    %88 = vmatpush1.msra.mxu0 0.0
    %89 = vmatprep.subr.mxu0 0.0
    %90 = vmatpush1.msra.mxu0 0.0
    %91 = vmatprep.subr.mxu0 0.0
    %92 = vmatpush1.msra.mxu0 0.0
    %93 = vmatprep.subr.mxu0 0.0
    %94 = vmatpush1.msra.mxu0 0.0
    %95 = vmatprep.subr.mxu0 0.0
    %96 = vmatpush1.msra.mxu0 0.0
    %97 = vmatprep.subr.mxu0 0.0
    %98 = vmatpush1.msra.mxu0 0.0
    %99 = vmatprep.subr.mxu0 0.0
    %100 = vmatpush1.msra.mxu0 0.0
    %101 = vmatprep.subr.mxu0 0.0
    %102 = vmatpush1.msra.mxu0 0.0
    %103 = vmatprep.subr.mxu0 0.0
    %104 = vmatpush1.msra.mxu0 0.0
    %105 = vmatprep.subr.mxu0 0.0
    %106 = vmatpush1.msra.mxu0 0.0
    %107 = vmatprep.subr.mxu0 0.0
    %108 = vmatpush1.msra.mxu0 0.0
    %109 = vmatprep.subr.mxu0 0.0
    %110 = vmatpush1.msra.mxu0 0.0
    %111 = vmatprep.subr.mxu0 0.0
    %112 = vmatpush1.msra.mxu0 0.0
    %113 = vmatprep.subr.mxu0 0.0
    %114 = vmatpush1.msra.mxu0 0.0
    %115 = vmatprep.subr.mxu0 0.0
    %116 = vmatpush1.msra.mxu0 0.0
    %117 = vmatprep.subr.mxu0 0.0
    %118 = vmatpush1.msra.mxu0 0.0
    %119 = vmatprep.subr.mxu0 0.0
    %120 = vmatpush1.msra.mxu0 0.0
    %121 = vmatprep.mubr.f32.mxu0 0.0
    %122 = vmatmul.mubr.f32.gmra.mrb[0].mxu0 %v55
    %v123 = vpop.f32.mrb[0].mxu0
    %v124 = vadd.f32 %v51, %v123
    %v125 = vpop.f32.mrb[0].mxu0
    %126 = vdwg.mxu0
    %v127 = vtanh.pop %v124
    %128 = vst [vmem:[#allocation7] sm:$0xff] %v127
    // Predicated region
    $region22: #{tpu_custom_call.1} parent=1 // pred_check
      _
    $region23: #{tpu_custom_call.1} parent=1 // pred_check_branch
      %130 = sbr.rel (0) target = $region25
    $region24: #{tpu_custom_call.1} parent=1 // pred_region
      %s132 = ssub.s32 128, 128
      %133 = vsyncadd [#allocation4], %s132
      %s135 = sshll.u32 [#allocation7], 4
      %s136 = int_to_ptr.vmem [resolvable:$true] %s135
      %138 = dma.vmem_to_hbm [thread:$0]  %s136, 128, %s3, [#allocation4]
    $region25: #{tpu_custom_call.1} parent=1 // pred_fallthru
      _
    // Predicated region
    $region26: #{tpu_custom_call.1} parent=1 // pred_check
      _
    $region27: #{tpu_custom_call.1} parent=1 // pred_check_branch
      %140 = sbr.rel (0) target = $region29
    $region28: #{tpu_custom_call.1} parent=1 // pred_region
      %141 = dma.done [#allocation4], 128
    $region29: #{tpu_custom_call.1} parent=1 // pred_fallthru
      _
    %142 = vsyncpa [#allocation3], 1
    %143 = vsyncpa [#allocation6], 1
    %144 = vsyncpa [#allocation4], 1

</llo_original>
